<compile_context>
chip_gen: v7x
topology: tpu7x:2x2x1
jax: 0.10.0
libtpu: 0.0.40
codegen_flags: <defaults>
</compile_context>

<pallas_src>
import functools

import jax
import jax.numpy as jnp
from jax import lax
from jax.experimental import pallas as pl
from jax.experimental.pallas import tpu as pltpu

LANE = 128


def _round_up(v, m):
    return ((v + m - 1) // m) * m


# ---------------------------------------------------------------------------
# Fused Pallas kernel: conv1 + ReLU + conv2 + log_softmax (all f32)
# ---------------------------------------------------------------------------
def _gcn_fused_kernel(adj_ref, dinv_ref, x_ref, w1_ref, b1_ref, w2_ref, b2_ref,
                      o_ref, *, num_classes):
    adj = adj_ref[...]          # [N, N]  f32 (binary adjacency + self loops)
    dinv = dinv_ref[...]        # [N, 1]  f32 deg^{-1/2}

    # ---- layer 1: h = relu(A_hat @ (X @ W1) + b1) -------------------------
    xw = jnp.dot(x_ref[...], w1_ref[...],
                 preferred_element_type=jnp.float32)            # [N, Hp]
    xw = xw * dinv                                              # fold col scale
    h = jnp.dot(adj, xw, preferred_element_type=jnp.float32)    # [N, Hp]
    h = h * dinv + b1_ref[...]                                  # fold row scale
    h = jnp.maximum(h, 0.0)                                     # ReLU (VPU)

    # TODO(synk): dropout is identity here (eval-mode forward); training-mode
    # dropout would use pltpu.prng_seed / pltpu.prng_random_bits.

    # ---- layer 2: z = A_hat @ (h @ W2) + b2 -------------------------------
    hw = jnp.dot(h, w2_ref[...], preferred_element_type=jnp.float32)  # [N, Cp]
    hw = hw * dinv
    z = jnp.dot(adj, hw, preferred_element_type=jnp.float32)
    z = z * dinv + b2_ref[...]                                  # [N, Cp]

    # ---- log_softmax over the true class columns (padded cols masked) -----
    col = lax.broadcasted_iota(jnp.int32, z.shape, 1)
    z = jnp.where(col < num_classes, z, -1e30)
    m = jnp.max(z, axis=-1, keepdims=True)
    s = z - m
    lse = jnp.log(jnp.sum(jnp.exp(s), axis=-1, keepdims=True))
    o_ref[...] = (s - lse).astype(o_ref.dtype)                  # lane-dense store


# ---------------------------------------------------------------------------
# Static (per-graph / per-params) preprocessing — run ONCE, not per call
# ---------------------------------------------------------------------------
def build_adj_and_dinv(edge_index, num_nodes):
    src = edge_index[0]
    dst = edge_index[1]
    adj = jnp.zeros((num_nodes, num_nodes), jnp.float32)
    # A[target, source] = 1 for each edge source -> target
    # (deduplicates parallel edges; matches PyG only for simple graphs)
    adj = adj.at[dst, src].set(1.0)
    adj = adj + jnp.eye(num_nodes, dtype=jnp.float32)            # self loops
    deg = jnp.sum(adj, axis=1)
    dinv = jnp.where(deg > 0, lax.rsqrt(deg), 0.0)
    return adj, dinv.reshape(num_nodes, 1)


def prepare_gcn_inputs(x, edge_index, params):
    """Hoisted preprocessing: adjacency build + lane padding of params."""
    n, f_in = x.shape
    hidden = params["w1"].shape[1]
    classes = params["w2"].shape[1]
    h_pad = _round_up(hidden, LANE)
    c_pad = _round_up(classes, LANE)

    adj, dinv = build_adj_and_dinv(edge_index, n)

    # Keep x / W1 at the true K=8 contraction dim (no 16x MXU/DMA blow-up);
    # pad only the hidden/class lane dims so outputs & stores stay 128-dense.
    w1_p = jnp.pad(params["w1"], ((0, 0), (0, h_pad - hidden)))
    b1_p = jnp.pad(params["b1"], (0, h_pad - hidden)).reshape(1, h_pad)
    w2_p = jnp.pad(params["w2"],
                   ((0, h_pad - hidden), (0, c_pad - classes)))
    b2_p = jnp.pad(params["b2"], (0, c_pad - classes)).reshape(1, c_pad)

    prepared = dict(adj=adj, dinv=dinv, x=x.astype(jnp.float32),
                    w1=w1_p, b1=b1_p, w2=w2_p, b2=b2_p)
    # Materialize on device once so the jitted forward sees ready arrays.
    return jax.tree_util.tree_map(jax.block_until_ready, prepared), classes


# ---------------------------------------------------------------------------
# GCN forward (single fused pallas_call, jitted; num_classes static)
# ---------------------------------------------------------------------------
@functools.partial(jax.jit, static_argnames=("num_classes",))
def gcn_forward(adj, dinv, x, w1, b1, w2, b2, *, num_classes):
    n = x.shape[0]
    f_in = x.shape[1]
    h_pad = w1.shape[1]
    c_pad = w2.shape[1]

    kernel = functools.partial(_gcn_fused_kernel, num_classes=num_classes)
    out_p = pl.pallas_call(
        kernel,
        out_shape=jax.ShapeDtypeStruct((n, c_pad), jnp.float32),
        grid=(1,),
        in_specs=[
            pl.BlockSpec((n, n), lambda i: (0, 0)),          # A (binary) [N, N]
            pl.BlockSpec((n, 1), lambda i: (0, 0)),          # deg^{-1/2} [N, 1]
            pl.BlockSpec((n, f_in), lambda i: (0, 0)),       # X          [N, F]
            pl.BlockSpec((f_in, h_pad), lambda i: (0, 0)),   # W1         [F, Hp]
            pl.BlockSpec((1, h_pad), lambda i: (0, 0)),      # b1         [1, Hp]
            pl.BlockSpec((h_pad, c_pad), lambda i: (0, 0)),  # W2         [Hp, Cp]
            pl.BlockSpec((1, c_pad), lambda i: (0, 0)),      # b2         [1, Cp]
        ],
        out_specs=pl.BlockSpec((n, c_pad), lambda i: (0, 0)),
        compiler_params=pltpu.CompilerParams(
            dimension_semantics=("arbitrary",)),
    )(adj, dinv, x, w1, b1, w2, b2)

    return out_p[:, :num_classes]


# ---------------------------------------------------------------------------
# Pure-JAX reference (f32) for correctness checking
# ---------------------------------------------------------------------------
def gcn_reference(x, edge_index, params):
    n = x.shape[0]
    adj, dinv = build_adj_and_dinv(edge_index, n)
    a_hat = dinv * adj * dinv.reshape(1, n)
    h = jnp.maximum(a_hat @ (x @ params["w1"]) + params["b1"], 0.0)
    z = a_hat @ (h @ params["w2"]) + params["b2"]
    return jax.nn.log_softmax(z, axis=1)


# ---------------------------------------------------------------------------
# Main
# ---------------------------------------------------------------------------
if __name__ == "__main__":
    num_nodes = 32
    features = 8
    hidden_dimension = 16
    classes = 4

    key = jax.random.PRNGKey(0)
    k_x, k_w1, k_w2, k_e = jax.random.split(key, 4)

    # Node features [N, F]
    x = jax.random.normal(k_x, (num_nodes, features), dtype=jnp.float32)

    # Deterministic undirected graph: ring + a few extra edges (both directions)
    ring_src = jnp.arange(num_nodes, dtype=jnp.int32)
    ring_dst = (ring_src + 1) % num_nodes
    extra_src = jnp.array([0, 5, 10, 15, 20, 25], dtype=jnp.int32)
    extra_dst = jnp.array([16, 21, 26, 31, 4, 9], dtype=jnp.int32)
    src = jnp.concatenate([ring_src, ring_dst, extra_src, extra_dst])
    dst = jnp.concatenate([ring_dst, ring_src, extra_dst, extra_src])
    edge_index = jnp.stack([src, dst], axis=0)  # [2, E], int32

    # Deterministic GCNConv parameters (Glorot-style scale), bias=0
    s1 = (6.0 / (features + hidden_dimension)) ** 0.5
    s2 = (6.0 / (hidden_dimension + classes)) ** 0.5
    params = {
        "w1": jax.random.uniform(k_w1, (features, hidden_dimension),
                                 jnp.float32, -s1, s1),
        "b1": jnp.zeros((hidden_dimension,), jnp.float32),
        "w2": jax.random.uniform(k_w2, (hidden_dimension, classes),
                                 jnp.float32, -s2, s2),
        "b2": jnp.zeros((classes,), jnp.float32),
    }

    # One-time preprocessing (adjacency build + padding), hoisted out of the
    # per-call path; the per-call forward is a single jitted pallas_call.
    prepared, n_cls = prepare_gcn_inputs(x, edge_index, params)

    out = gcn_forward(prepared["adj"], prepared["dinv"], prepared["x"],
                      prepared["w1"], prepared["b1"], prepared["w2"],
                      prepared["b2"], num_classes=n_cls)
    out = jax.block_until_ready(out)

    # Sanity 1: shape + rows of log_softmax output sum to 1 in prob space.
    assert out.shape == (num_nodes, classes)
    row_sums = jnp.sum(jnp.exp(out), axis=1)
    assert bool(jnp.all(jnp.abs(row_sums - 1.0) < 1e-4))

    # Sanity 2: matches a pure-JAX f32 reference (all-f32 kernel -> tight tol).
    ref = gcn_reference(x, edge_index, params)
    assert bool(jnp.max(jnp.abs(out - ref)) < 1e-3)

    print("KERNEL_OK")
</pallas_src>

<mosaic_0001>
module attributes {stable_mosaic.version = 11 : i64} {
  func.func @_gcn_fused_kernel(%arg0: i32, %arg1: memref<32x32xf32, #tpu.memory_space<vmem>>, %arg2: memref<32x1xf32, #tpu.memory_space<vmem>>, %arg3: memref<32x8xf32, #tpu.memory_space<vmem>>, %arg4: memref<8x128xf32, #tpu.memory_space<vmem>>, %arg5: memref<1x128xf32, #tpu.memory_space<vmem>>, %arg6: memref<128x128xf32, #tpu.memory_space<vmem>>, %arg7: memref<1x128xf32, #tpu.memory_space<vmem>>, %arg8: memref<32x128xf32, #tpu.memory_space<vmem>>) attributes {dimension_semantics = [#tpu.dimension_semantics<arbitrary>], iteration_bounds = array<i64: 1>, scalar_prefetch = 0 : i64, scratch_operands = 0 : i64, tpu.core_type = #tpu.core_type<tc>, window_params = [{pipeline_mode = #tpu.pipeline_mode<synchronous>, transform_indices = @transform_0, window_bounds = array<i64: 32, 32>}, {pipeline_mode = #tpu.pipeline_mode<synchronous>, transform_indices = @transform_1, window_bounds = array<i64: 32, 1>}, {pipeline_mode = #tpu.pipeline_mode<synchronous>, transform_indices = @transform_2, window_bounds = array<i64: 32, 8>}, {pipeline_mode = #tpu.pipeline_mode<synchronous>, transform_indices = @transform_3, window_bounds = array<i64: 8, 128>}, {pipeline_mode = #tpu.pipeline_mode<synchronous>, transform_indices = @transform_4, window_bounds = array<i64: 1, 128>}, {pipeline_mode = #tpu.pipeline_mode<synchronous>, transform_indices = @transform_5, window_bounds = array<i64: 128, 128>}, {pipeline_mode = #tpu.pipeline_mode<synchronous>, transform_indices = @transform_6, window_bounds = array<i64: 1, 128>}, {pipeline_mode = #tpu.pipeline_mode<synchronous>, transform_indices = @transform_7, window_bounds = array<i64: 32, 128>}]} {
    %c0 = arith.constant 0 : index
    %c0_0 = arith.constant 0 : index
    %0 = vector.load %arg1[%c0, %c0_0] : memref<32x32xf32, #tpu.memory_space<vmem>>, vector<32x32xf32>
    %c0_1 = arith.constant 0 : index
    %c0_2 = arith.constant 0 : index
    %1 = vector.load %arg2[%c0_1, %c0_2] : memref<32x1xf32, #tpu.memory_space<vmem>>, vector<32x1xf32>
    %c0_3 = arith.constant 0 : index
    %c0_4 = arith.constant 0 : index
    %2 = vector.load %arg3[%c0_3, %c0_4] : memref<32x8xf32, #tpu.memory_space<vmem>>, vector<32x8xf32>
    %c0_5 = arith.constant 0 : index
    %c0_6 = arith.constant 0 : index
    %3 = vector.load %arg4[%c0_5, %c0_6] : memref<8x128xf32, #tpu.memory_space<vmem>>, vector<8x128xf32>
    %cst = arith.constant dense<0.000000e+00> : vector<32x128xf32>
    %4 = tpu.matmul %2, %3, %cst {dimension_numbers = #tpu.dot_dimension_numbers<[1], [0], [0], [1], [0, 0, 1, 1], [], []>} : vector<32x8xf32>, vector<8x128xf32>, vector<32x128xf32> -> vector<32x128xf32>
    %5 = vector.broadcast %1 : vector<32x1xf32> to vector<32x128xf32>
    %6 = arith.mulf %4, %5 : vector<32x128xf32>
    %cst_7 = arith.constant dense<0.000000e+00> : vector<32x128xf32>
    %7 = tpu.matmul %0, %6, %cst_7 {dimension_numbers = #tpu.dot_dimension_numbers<[1], [0], [0], [1], [0, 0, 1, 1], [], []>} : vector<32x32xf32>, vector<32x128xf32>, vector<32x128xf32> -> vector<32x128xf32>
    %8 = vector.broadcast %1 : vector<32x1xf32> to vector<32x128xf32>
    %9 = arith.mulf %7, %8 : vector<32x128xf32>
    %c0_8 = arith.constant 0 : index
    %c0_9 = arith.constant 0 : index
    %10 = vector.load %arg5[%c0_8, %c0_9] : memref<1x128xf32, #tpu.memory_space<vmem>>, vector<1x128xf32>
    %11 = vector.broadcast %10 : vector<1x128xf32> to vector<32x128xf32>
    %12 = arith.addf %9, %11 : vector<32x128xf32>
    %cst_10 = arith.constant 0.000000e+00 : f32
    %13 = vector.broadcast %cst_10 : f32 to vector<32x128xf32>
    %14 = arith.maximumf %12, %13 : vector<32x128xf32>
    %c0_11 = arith.constant 0 : index
    %c0_12 = arith.constant 0 : index
    %15 = vector.load %arg6[%c0_11, %c0_12] : memref<128x128xf32, #tpu.memory_space<vmem>>, vector<128x128xf32>
    %cst_13 = arith.constant dense<0.000000e+00> : vector<32x128xf32>
    %16 = tpu.matmul %14, %15, %cst_13 {dimension_numbers = #tpu.dot_dimension_numbers<[1], [0], [0], [1], [0, 0, 1, 1], [], []>} : vector<32x128xf32>, vector<128x128xf32>, vector<32x128xf32> -> vector<32x128xf32>
    %17 = vector.broadcast %1 : vector<32x1xf32> to vector<32x128xf32>
    %18 = arith.mulf %16, %17 : vector<32x128xf32>
    %cst_14 = arith.constant dense<0.000000e+00> : vector<32x128xf32>
    %19 = tpu.matmul %0, %18, %cst_14 {dimension_numbers = #tpu.dot_dimension_numbers<[1], [0], [0], [1], [0, 0, 1, 1], [], []>} : vector<32x32xf32>, vector<32x128xf32>, vector<32x128xf32> -> vector<32x128xf32>
    %20 = vector.broadcast %1 : vector<32x1xf32> to vector<32x128xf32>
    %21 = arith.mulf %19, %20 : vector<32x128xf32>
    %c0_15 = arith.constant 0 : index
    %c0_16 = arith.constant 0 : index
    %22 = vector.load %arg7[%c0_15, %c0_16] : memref<1x128xf32, #tpu.memory_space<vmem>>, vector<1x128xf32>
    %23 = vector.broadcast %22 : vector<1x128xf32> to vector<32x128xf32>
    %24 = arith.addf %21, %23 : vector<32x128xf32>
    %25 = tpu.iota {dimensions = array<i32: 1>} : vector<32x128xi32>
    %c4_i32 = arith.constant 4 : i32
    %26 = vector.broadcast %c4_i32 : i32 to vector<32x128xi32>
    %27 = arith.cmpi slt, %25, %26 : vector<32x128xi32>
    %cst_17 = arith.constant -1.000000e+30 : f32
    %28 = vector.broadcast %cst_17 : f32 to vector<32x128xf32>
    %29 = arith.select %27, %24, %28 : vector<32x128xi1>, vector<32x128xf32>
    %cst_18 = arith.constant dense<0xFF800000> : vector<32xf32>
    %30 = vector.multi_reduction <maximumf>, %29, %cst_18 [1] : vector<32x128xf32> to vector<32xf32>
    %31 = vector.shape_cast %30 : vector<32xf32> to vector<32x1xf32>
    %32 = vector.broadcast %31 : vector<32x1xf32> to vector<32x128xf32>
    %33 = arith.subf %29, %32 : vector<32x128xf32>
    %34 = math.exp %33 : vector<32x128xf32>
    %cst_19 = arith.constant dense<0.000000e+00> : vector<32xf32>
    %35 = vector.multi_reduction <add>, %34, %cst_19 [1] : vector<32x128xf32> to vector<32xf32>
    %36 = vector.shape_cast %35 : vector<32xf32> to vector<32x1xf32>
    %37 = math.log %36 : vector<32x1xf32>
    %38 = vector.broadcast %37 : vector<32x1xf32> to vector<32x128xf32>
    %39 = arith.subf %33, %38 : vector<32x128xf32>
    %c0_20 = arith.constant 0 : index
    %c0_21 = arith.constant 0 : index
    %40 = vector.load %arg8[%c0_20, %c0_21] : memref<32x128xf32, #tpu.memory_space<vmem>>, vector<32x128xf32>
    tpu.vector_store %arg8[%c0_20, %c0_21], %39 {strides = array<i32>} : memref<32x128xf32, #tpu.memory_space<vmem>>, vector<32x128xf32>,
    return
  }
  func.func @transform_0(%arg0: i32) -> (i32, i32) {
    %c0_i32 = arith.constant 0 : i32
    %c0_i32_0 = arith.constant 0 : i32
    %c0_i32_1 = arith.constant 0 : i32
    return %c0_i32, %c0_i32_0 : i32, i32
  }
  func.func @transform_1(%arg0: i32) -> (i32, i32) {
    %c0_i32 = arith.constant 0 : i32
    %c0_i32_0 = arith.constant 0 : i32
    %c0_i32_1 = arith.constant 0 : i32
    return %c0_i32, %c0_i32_0 : i32, i32
  }
  func.func @transform_2(%arg0: i32) -> (i32, i32) {
    %c0_i32 = arith.constant 0 : i32
    %c0_i32_0 = arith.constant 0 : i32
    %c0_i32_1 = arith.constant 0 : i32
    return %c0_i32, %c0_i32_0 : i32, i32
  }
  func.func @transform_3(%arg0: i32) -> (i32, i32) {
    %c0_i32 = arith.constant 0 : i32
    %c0_i32_0 = arith.constant 0 : i32
    %c0_i32_1 = arith.constant 0 : i32
    return %c0_i32, %c0_i32_0 : i32, i32
  }
  func.func @transform_4(%arg0: i32) -> (i32, i32) {
    %c0_i32 = arith.constant 0 : i32
    %c0_i32_0 = arith.constant 0 : i32
    %c0_i32_1 = arith.constant 0 : i32
    return %c0_i32, %c0_i32_0 : i32, i32
  }
  func.func @transform_5(%arg0: i32) -> (i32, i32) {
    %c0_i32 = arith.constant 0 : i32
    %c0_i32_0 = arith.constant 0 : i32
    %c0_i32_1 = arith.constant 0 : i32
    return %c0_i32, %c0_i32_0 : i32, i32
  }
  func.func @transform_6(%arg0: i32) -> (i32, i32) {
    %c0_i32 = arith.constant 0 : i32
    %c0_i32_0 = arith.constant 0 : i32
    %c0_i32_1 = arith.constant 0 : i32
    return %c0_i32, %c0_i32_0 : i32, i32
  }
  func.func @transform_7(%arg0: i32) -> (i32, i32) {
    %c0_i32 = arith.constant 0 : i32
    %c0_i32_0 = arith.constant 0 : i32
    %c0_i32_1 = arith.constant 0 : i32
    return %c0_i32, %c0_i32_0 : i32, i32
  }
}

</mosaic_0001>

<llo_original>
// kernel: gcn_forward.1
$region0: #{gcn_forward.1}
  #allocation0 [shape = 'u32[]', space=smem, size = 0x4, offset = 0x4, fixed_abs, tag = 'smem constant byte address 0x4 - core index']
  #allocation1 [shape = 'u32[144,128]{1,0:T(1,128)}', space=vmem, size = 0x12000, scoped, tag = 'internal scratch']
  %s0 = inlined_call_operand.vmem [shape: f32[32,32], index: 0, kind: input, shape index: {}]
  %s1 = inlined_call_operand.vmem [shape: f32[32,1], index: 1, kind: input, shape index: {}]
  %s2 = inlined_call_operand.vmem [shape: f32[32,8], index: 2, kind: input, shape index: {}]
  %s3 = inlined_call_operand.vmem [shape: f32[8,128], index: 3, kind: input, shape index: {}]
  %s4 = inlined_call_operand.vmem [shape: f32[1,128], index: 4, kind: input, shape index: {}]
  %s5 = inlined_call_operand.hbm [shape: f32[128,128], index: 5, kind: input, shape index: {}]
  %s6 = inlined_call_operand.vmem [shape: f32[1,128], index: 6, kind: input, shape index: {}]
  %s7 = inlined_call_operand.vmem [shape: f32[32,128], index: 7, kind: output, shape index: {}]
  %s8 = sld [smem:[#allocation0]]
  $region42: #{gcn_forward.1} parent=0
    _
  %s10 = ssub.s32 1, %s8
  %s11 = scalar_select 0, %s10, %s8
  $region1: #{gcn_forward.1} parent=0
    #allocation2 [shape = 'u8[65536]{0}', space=vmem, size = 0x10000, scoped, tag = 'input window, operand 5, single buffered']
    #allocation3 [shape = 's32[1]{0}', space=sflag, size = 0x4, scoped, tag = 'scoped memory for gcn_forward.1']
    %12 = vsyncpa [#allocation3], 0
    // Predicated region
    $region2: #{gcn_forward.1} parent=1 // pred_check
      _
    $region3: #{gcn_forward.1} parent=1 // pred_check_branch
      %14 = sbr.rel (0) target = $region5
    $region4: #{gcn_forward.1} parent=1 // pred_region
      _
    $region5: #{gcn_forward.1} parent=1 // pred_fallthru
      _
    // Predicated region
    $region6: #{gcn_forward.1} parent=1 // pred_check
      _
    $region7: #{gcn_forward.1} parent=1 // pred_check_branch
      %16 = sbr.rel (0) target = $region9
    $region8: #{gcn_forward.1} parent=1 // pred_region
      _
    $region9: #{gcn_forward.1} parent=1 // pred_fallthru
      _
    // Predicated region
    $region10: #{gcn_forward.1} parent=1 // pred_check
      _
    $region11: #{gcn_forward.1} parent=1 // pred_check_branch
      %18 = sbr.rel (0) target = $region13
    $region12: #{gcn_forward.1} parent=1 // pred_region
      _
    $region13: #{gcn_forward.1} parent=1 // pred_fallthru
      _
    // Predicated region
    $region14: #{gcn_forward.1} parent=1 // pred_check
      _
    $region15: #{gcn_forward.1} parent=1 // pred_check_branch
      %20 = sbr.rel (0) target = $region17
    $region16: #{gcn_forward.1} parent=1 // pred_region
      _
    $region17: #{gcn_forward.1} parent=1 // pred_fallthru
      _
    // Predicated region
    $region18: #{gcn_forward.1} parent=1 // pred_check
      _
    $region19: #{gcn_forward.1} parent=1 // pred_check_branch
      %22 = sbr.rel (0) target = $region21
    $region20: #{gcn_forward.1} parent=1 // pred_region
      _
    $region21: #{gcn_forward.1} parent=1 // pred_fallthru
      _
    // Predicated region
    $region22: #{gcn_forward.1} parent=1 // pred_check
      _
    $region23: #{gcn_forward.1} parent=1 // pred_check_branch
      %24 = sbr.rel (0) target = $region25
    $region24: #{gcn_forward.1} parent=1 // pred_region
      %s26 = ssub.s32 2048, 2048
      %27 = vsyncadd [#allocation3], %s26
      %s28 = sshll.u32 [#allocation2], 4
      %s29 = int_to_ptr.vmem [resolvable:$true] %s28
      %34 = dma.hbm_to_vmem [thread:$0]  %s5, 2048, %s29, [#allocation3], 128, 128, 8
    $region25: #{gcn_forward.1} parent=1 // pred_fallthru
      _
    // Predicated region
    $region26: #{gcn_forward.1} parent=1 // pred_check
      _
    $region27: #{gcn_forward.1} parent=1 // pred_check_branch
      %36 = sbr.rel (0) target = $region29
    $region28: #{gcn_forward.1} parent=1 // pred_region
      _
    $region29: #{gcn_forward.1} parent=1 // pred_fallthru
      _
    // Predicated region
    $region30: #{gcn_forward.1} parent=1 // pred_check
      _
    $region31: #{gcn_forward.1} parent=1 // pred_check_branch
      %38 = sbr.rel (0) target = $region33
    $region32: #{gcn_forward.1} parent=1 // pred_region
      %39 = dma.done [#allocation3], 2048
    $region33: #{gcn_forward.1} parent=1 // pred_fallthru
      _
    %v40 = vld [vmem:[%s0] sm:$0xff]
    %v41 = vld [vmem:[%s0 + $0x8] sm:$0xff]
    %v42 = vld [vmem:[%s0 + $0x10] sm:$0xff]
    %v43 = vld [vmem:[%s0 + $0x18] sm:$0xff]
    %v44 = vld [vmem:[%s1] sm:$0xff]
    %v45 = vld [vmem:[%s1 + $0x8] sm:$0xff]
    %v46 = vld [vmem:[%s1 + $0x10] sm:$0xff]
    %v47 = vld [vmem:[%s1 + $0x18] sm:$0xff]
    %v48 = vld [vmem:[%s2] sm:$0xff]
    %v49 = vld [vmem:[%s2 + $0x8] sm:$0xff]
    %v50 = vld [vmem:[%s2 + $0x10] sm:$0xff]
    %v51 = vld [vmem:[%s2 + $0x18] sm:$0xff]
    %v52 = vld [vmem:[%s3] sm:$0xff]
    %vm53 = vcmask 64512
    %v55 = vsel %vm53, %v48, 0
    %v58 = vsel %vm53, %v49, 0
    %v61 = vsel %vm53, %v50, 0
    %v64 = vsel %vm53, %v51, 0
    %66 = vmatprep.subr.mxu0 0.0
    %67 = vmatpush1.msra.mxu0 %v52
    %68 = vmatprep.subr.mxu0 0.0
    %69 = vmatpush1.msra.mxu0 0.0
    %70 = vmatprep.subr.mxu0 0.0
    %71 = vmatpush1.msra.mxu0 0.0
    %72 = vmatprep.subr.mxu0 0.0
    %73 = vmatpush1.msra.mxu0 0.0
    %74 = vmatprep.subr.mxu0 0.0
    %75 = vmatpush1.msra.mxu0 0.0
    %76 = vmatprep.subr.mxu0 0.0
    %77 = vmatpush1.msra.mxu0 0.0
    %78 = vmatprep.subr.mxu0 0.0
    %79 = vmatpush1.msra.mxu0 0.0
    %80 = vmatprep.subr.mxu0 0.0
    %81 = vmatpush1.msra.mxu0 0.0
    %82 = vmatprep.subr.mxu0 0.0
    %83 = vmatpush1.msra.mxu0 0.0
    %84 = vmatprep.subr.mxu0 0.0
    %85 = vmatpush1.msra.mxu0 0.0
    %86 = vmatprep.subr.mxu0 0.0
    %87 = vmatpush1.msra.mxu0 0.0
    %88 = vmatprep.subr.mxu0 0.0
    %89 = vmatpush1.msra.mxu0 0.0
    %90 = vmatprep.subr.mxu0 0.0
    %91 = vmatpush1.msra.mxu0 0.0
    %92 = vmatprep.subr.mxu0 0.0
    %93 = vmatpush1.msra.mxu0 0.0
    %94 = vmatprep.subr.mxu0 0.0
    %95 = vmatpush1.msra.mxu0 0.0
    %96 = vmatprep.subr.mxu0 0.0
    %97 = vmatpush1.msra.mxu0 0.0
    %98 = vmatprep.subr.mxu0 0.0
    %99 = vmatpush1.msra.mxu0 0.0
    %100 = vmatprep.subr.mxu0 0.0
    %101 = vmatpush1.msra.mxu0 0.0
    %102 = vmatprep.subr.mxu0 0.0
    %103 = vmatpush1.msra.mxu0 0.0
    %104 = vmatprep.subr.mxu0 0.0
    %105 = vmatpush1.msra.mxu0 0.0
    %106 = vmatprep.subr.mxu0 0.0
    %107 = vmatpush1.msra.mxu0 0.0
    %108 = vmatprep.subr.mxu0 0.0
    %109 = vmatpush1.msra.mxu0 0.0
    %110 = vmatprep.subr.mxu0 0.0
    %111 = vmatpush1.msra.mxu0 0.0
    %112 = vmatprep.subr.mxu0 0.0
    %113 = vmatpush1.msra.mxu0 0.0
    %114 = vmatprep.subr.mxu0 0.0
    %115 = vmatpush1.msra.mxu0 0.0
    %116 = vmatprep.subr.mxu0 0.0
    %117 = vmatpush1.msra.mxu0 0.0
    %118 = vmatprep.subr.mxu0 0.0
    %119 = vmatpush1.msra.mxu0 0.0
    %120 = vmatprep.subr.mxu0 0.0
    %121 = vmatpush1.msra.mxu0 0.0
    %122 = vmatprep.subr.mxu0 0.0
    %123 = vmatpush1.msra.mxu0 0.0
    %124 = vmatprep.subr.mxu0 0.0
    %125 = vmatpush1.msra.mxu0 0.0
    %126 = vmatprep.subr.mxu0 0.0
    %127 = vmatpush1.msra.mxu0 0.0
    %128 = vmatprep.subr.mxu0 0.0
    %129 = vmatpush1.msra.mxu0 0.0
    %130 = vmatprep.mubr.f32.mxu0 0.0
    %131 = vmatmul.mubr.f32.gmra.mrb[0].mxu0 %v55
    %v132 = vpop.f32.mrb[0].mxu0
    %v133 = vadd.f32 0.0, %v132
    %v134 = vpop.f32.mrb[0].mxu0
    %135 = vmatprep.mubr.f32.mxu0 0.0
    %136 = vmatmul.mubr.f32.gmra.mrb[0].mxu0 %v58
    %v137 = vpop.f32.mrb[0].mxu0
    %v138 = vadd.f32 0.0, %v137
    %v139 = vpop.f32.mrb[0].mxu0
    %140 = vmatprep.mubr.f32.mxu0 0.0
    %141 = vmatmul.mubr.f32.gmra.mrb[0].mxu0 %v61
    %v142 = vpop.f32.mrb[0].mxu0
    %v143 = vadd.f32 0.0, %v142
    %v144 = vpop.f32.mrb[0].mxu0
    %145 = vmatprep.mubr.f32.mxu0 0.0
    %146 = vmatmul.mubr.f32.gmra.mrb[0].mxu0 %v64
    %v147 = vpop.f32.mrb[0].mxu0
    %v148 = vadd.f32 0.0, %v147
    %v149 = vpop.f32.mrb[0].mxu0
    %150 = vdwg.mxu0
    %152 = vset.pattern.permute.xlu0 0
    %153 = vperm.xlu0 %152, %v44
    %v154 = vpop.permute.xlu0 %153
    %157 = vset.pattern.permute.xlu0 0
    %158 = vperm.xlu0 %157, %v45
    %v159 = vpop.permute.xlu0 %158
    %162 = vset.pattern.permute.xlu0 0
    %163 = vperm.xlu0 %162, %v46
    %v164 = vpop.permute.xlu0 %163
    %167 = vset.pattern.permute.xlu0 0
    %168 = vperm.xlu0 %167, %v47
    %v169 = vpop.permute.xlu0 %168
    %v171 = vmul.f32 %v133, %v154
    %v172 = vmul.f32 %v138, %v159
    %v173 = vmul.f32 %v143, %v164
    %v174 = vmul.f32 %v148, %v169
    %vm175 = vcmask 261120
    %v177 = vsel %vm175, %v40, 0
    %v180 = vsel %vm175, %v41, 0
    %v183 = vsel %vm175, %v42, 0
    %v186 = vsel %vm175, %v43, 0
    %188 = vmatprep.subr.mxu0 0.0
    %189 = vmatpush1.msra.mxu0 %v171
    %190 = vmatprep.subr.mxu0 0.0
    %191 = vmatpush1.msra.mxu0 %v172
    %192 = vmatprep.subr.mxu0 0.0
    %193 = vmatpush1.msra.mxu0 %v173
    %194 = vmatprep.subr.mxu0 0.0
    %195 = vmatpush1.msra.mxu0 %v174
    %196 = vmatprep.subr.mxu0 0.0
    %197 = vmatpush1.msra.mxu0 0.0
    %198 = vmatprep.subr.mxu0 0.0
    %199 = vmatpush1.msra.mxu0 0.0
    %200 = vmatprep.subr.mxu0 0.0
    %201 = vmatpush1.msra.mxu0 0.0
    %202 = vmatprep.subr.mxu0 0.0
    %203 = vmatpush1.msra.mxu0 0.0
    %204 = vmatprep.subr.mxu0 0.0
    %205 = vmatpush1.msra.mxu0 0.0
    %206 = vmatprep.subr.mxu0 0.0
    %207 = vmatpush1.msra.mxu0 0.0
    %208 = vmatprep.subr.mxu0 0.0
    %209 = vmatpush1.msra.mxu0 0.0
    %210 = vmatprep.subr.mxu0 0.0
    %211 = vmatpush1.msra.mxu0 0.0
    %212 = vmatprep.subr.mxu0 0.0
    %213 = vmatpush1.msra.mxu0 0.0
    %214 = vmatprep.subr.mxu0 0.0
    %215 = vmatpush1.msra.mxu0 0.0
    %216 = vmatprep.subr.mxu0 0.0
    %217 = vmatpush1.msra.mxu0 0.0
    %218 = vmatprep.subr.mxu0 0.0
    %219 = vmatpush1.msra.mxu0 0.0
    %220 = vmatprep.subr.mxu0 0.0
    %221 = vmatpush1.msra.mxu0 0.0
    %222 = vmatprep.subr.mxu0 0.0
    %223 = vmatpush1.msra.mxu0 0.0
    %224 = vmatprep.subr.mxu0 0.0
    %225 = vmatpush1.msra.mxu0 0.0
    %226 = vmatprep.subr.mxu0 0.0
    %227 = vmatpush1.msra.mxu0 0.0
    %228 = vmatprep.subr.mxu0 0.0
    %229 = vmatpush1.msra.mxu0 0.0
    %230 = vmatprep.subr.mxu0 0.0
    %231 = vmatpush1.msra.mxu0 0.0
    %232 = vmatprep.subr.mxu0 0.0
    %233 = vmatpush1.msra.mxu0 0.0
    %234 = vmatprep.subr.mxu0 0.0
    %235 = vmatpush1.msra.mxu0 0.0
    %236 = vmatprep.subr.mxu0 0.0
    %237 = vmatpush1.msra.mxu0 0.0
    %238 = vmatprep.subr.mxu0 0.0
    %239 = vmatpush1.msra.mxu0 0.0
    %240 = vmatprep.subr.mxu0 0.0
    %241 = vmatpush1.msra.mxu0 0.0
    %242 = vmatprep.subr.mxu0 0.0
    %243 = vmatpush1.msra.mxu0 0.0
    %244 = vmatprep.subr.mxu0 0.0
    %245 = vmatpush1.msra.mxu0 0.0
    %246 = vmatprep.subr.mxu0 0.0
    %247 = vmatpush1.msra.mxu0 0.0
    %248 = vmatprep.subr.mxu0 0.0
    %249 = vmatpush1.msra.mxu0 0.0
    %250 = vmatprep.subr.mxu0 0.0
    %251 = vmatpush1.msra.mxu0 0.0
    %252 = vmatprep.mubr.f32.mxu0 0.0
    %253 = vmatmul.mubr.f32.gmra.mrb[0].mxu0 %v177
    %v254 = vpop.f32.mrb[0].mxu0
    %v255 = vadd.f32 0.0, %v254
    %v256 = vpop.f32.mrb[0].mxu0
    %257 = vmatprep.mubr.f32.mxu0 0.0
    %258 = vmatmul.mubr.f32.gmra.mrb[0].mxu0 %v180
    %v259 = vpop.f32.mrb[0].mxu0
    %v260 = vadd.f32 0.0, %v259
    %v261 = vpop.f32.mrb[0].mxu0
    %262 = vmatprep.mubr.f32.mxu0 0.0
    %263 = vmatmul.mubr.f32.gmra.mrb[0].mxu0 %v183
    %v264 = vpop.f32.mrb[0].mxu0
    %v265 = vadd.f32 0.0, %v264
    %v266 = vpop.f32.mrb[0].mxu0
    %267 = vmatprep.mubr.f32.mxu0 0.0
    %268 = vmatmul.mubr.f32.gmra.mrb[0].mxu0 %v186
    %v269 = vpop.f32.mrb[0].mxu0
    %v270 = vadd.f32 0.0, %v269
    %v271 = vpop.f32.mrb[0].mxu0
    %272 = vdwg.mxu0
    %v273 = vmul.f32 %v255, %v154
    %v274 = vmul.f32 %v260, %v159
    %v275 = vmul.f32 %v265, %v164
    %v276 = vmul.f32 %v270, %v169
    %v277 = vld [vmem:[%s4] sm:$0x1]
    %v279 = vlaneseq
    %v280 = vshrl.u32 %v279, 7
    %v281 = vsub.s32 0, %v280
    %v282 = vrot.slane %v277, %v281
    %v284 = vadd.f32 %v273, %v282
    %v285 = vadd.f32 %v274, %v282
    %v286 = vadd.f32 %v275, %v282
    %v287 = vadd.f32 %v276, %v282
    %v288 = vmax.f32 %v284, 0.0
    %v289 = vmax.f32 %v285, 0.0
    %v290 = vmax.f32 %v286, 0.0
    %v291 = vmax.f32 %v287, 0.0
    %v292 = vld [vmem:[#allocation2] sm:$0xff]
    %v293 = vld [vmem:[#allocation2 + $0x8] sm:$0xff]
    %v294 = vld [vmem:[#allocation2 + $0x10] sm:$0xff]
    %v295 = vld [vmem:[#allocation2 + $0x18] sm:$0xff]
    %v296 = vld [vmem:[#allocation2 + $0x20] sm:$0xff]
    %v297 = vld [vmem:[#allocation2 + $0x28] sm:$0xff]
    %v298 = vld [vmem:[#allocation2 + $0x30] sm:$0xff]
    %v299 = vld [vmem:[#allocation2 + $0x38] sm:$0xff]
    %v300 = vld [vmem:[#allocation2 + $0x40] sm:$0xff]
    %v301 = vld [vmem:[#allocation2 + $0x48] sm:$0xff]
    %v302 = vld [vmem:[#allocation2 + $0x50] sm:$0xff]
    %v303 = vld [vmem:[#allocation2 + $0x58] sm:$0xff]
    %v304 = vld [vmem:[#allocation2 + $0x60] sm:$0xff]
    %v305 = vld [vmem:[#allocation2 + $0x68] sm:$0xff]
    %v306 = vld [vmem:[#allocation2 + $0x70] sm:$0xff]
    %v307 = vld [vmem:[#allocation2 + $0x78] sm:$0xff]
    %308 = vmatprep.subr.mxu0 0.0
    %309 = vmatpush1.msra.mxu0 %v292
    %310 = vmatprep.subr.mxu0 0.0
    %311 = vmatpush1.msra.mxu0 %v293
    %312 = vmatprep.subr.mxu0 0.0
    %313 = vmatpush1.msra.mxu0 %v294
    %314 = vmatprep.subr.mxu0 0.0
    %315 = vmatpush1.msra.mxu0 %v295
    %316 = vmatprep.subr.mxu0 0.0
    %317 = vmatpush1.msra.mxu0 %v296
    %318 = vmatprep.subr.mxu0 0.0
    %319 = vmatpush1.msra.mxu0 %v297
    %320 = vmatprep.subr.mxu0 0.0
    %321 = vmatpush1.msra.mxu0 %v298
    %322 = vmatprep.subr.mxu0 0.0
    %323 = vmatpush1.msra.mxu0 %v299
    %324 = vmatprep.subr.mxu0 0.0
    %325 = vmatpush1.msra.mxu0 %v300
    %326 = vmatprep.subr.mxu0 0.0
    %327 = vmatpush1.msra.mxu0 %v301
    %328 = vmatprep.subr.mxu0 0.0
    %329 = vmatpush1.msra.mxu0 %v302
    %330 = vmatprep.subr.mxu0 0.0
    %331 = vmatpush1.msra.mxu0 %v303
    %332 = vmatprep.subr.mxu0 0.0
    %333 = vmatpush1.msra.mxu0 %v304
    %334 = vmatprep.subr.mxu0 0.0
    %335 = vmatpush1.msra.mxu0 %v305
    %336 = vmatprep.subr.mxu0 0.0
    %337 = vmatpush1.msra.mxu0 %v306
    %338 = vmatprep.subr.mxu0 0.0
    %339 = vmatpush1.msra.mxu0 %v307
    %340 = vmatprep.subr.mxu0 0.0
    %341 = vmatpush1.msra.mxu0 0.0
    %342 = vmatprep.subr.mxu0 0.0
    %343 = vmatpush1.msra.mxu0 0.0
    %344 = vmatprep.subr.mxu0 0.0
    %345 = vmatpush1.msra.mxu0 0.0
    %346 = vmatprep.subr.mxu0 0.0
    %347 = vmatpush1.msra.mxu0 0.0
    %348 = vmatprep.subr.mxu0 0.0
    %349 = vmatpush1.msra.mxu0 0.0
    %350 = vmatprep.subr.mxu0 0.0
    %351 = vmatpush1.msra.mxu0 0.0
    %352 = vmatprep.subr.mxu0 0.0
    %353 = vmatpush1.msra.mxu0 0.0
    %354 = vmatprep.subr.mxu0 0.0
    %355 = vmatpush1.msra.mxu0 0.0
    %356 = vmatprep.subr.mxu0 0.0
    %357 = vmatpush1.msra.mxu0 0.0
    %358 = vmatprep.subr.mxu0 0.0
    %359 = vmatpush1.msra.mxu0 0.0
    %360 = vmatprep.subr.mxu0 0.0
    %361 = vmatpush1.msra.mxu0 0.0
    %362 = vmatprep.subr.mxu0 0.0
    %363 = vmatpush1.msra.mxu0 0.0
    %364 = vmatprep.subr.mxu0 0.0
    %365 = vmatpush1.msra.mxu0 0.0
    %366 = vmatprep.subr.mxu0 0.0
    %367 = vmatpush1.msra.mxu0 0.0
    %368 = vmatprep.subr.mxu0 0.0
    %369 = vmatpush1.msra.mxu0 0.0
    %370 = vmatprep.subr.mxu0 0.0
    %371 = vmatpush1.msra.mxu0 0.0
    %372 = vmatprep.mubr.f32.mxu0 0.0
    %373 = vmatmul.mubr.f32.gmra.mrb[0].mxu0 %v288
    %v374 = vpop.f32.mrb[0].mxu0
    %v375 = vadd.f32 0.0, %v374
    %v376 = vpop.f32.mrb[0].mxu0
    %377 = vmatprep.mubr.f32.mxu0 0.0
    %378 = vmatmul.mubr.f32.gmra.mrb[0].mxu0 %v289
    %v379 = vpop.f32.mrb[0].mxu0
    %v380 = vadd.f32 0.0, %v379
    %v381 = vpop.f32.mrb[0].mxu0
    %382 = vmatprep.mubr.f32.mxu0 0.0
    %383 = vmatmul.mubr.f32.gmra.mrb[0].mxu0 %v290
    %v384 = vpop.f32.mrb[0].mxu0
    %v385 = vadd.f32 0.0, %v384
    %v386 = vpop.f32.mrb[0].mxu0
    %387 = vmatprep.mubr.f32.mxu0 0.0
    %388 = vmatmul.mubr.f32.gmra.mrb[0].mxu0 %v291
    %v389 = vpop.f32.mrb[0].mxu0
    %v390 = vadd.f32 0.0, %v389
    %v391 = vpop.f32.mrb[0].mxu0
    %392 = vdwg.mxu0
    %v393 = vmul.f32 %v375, %v154
    %v394 = vmul.f32 %v380, %v159
    %v395 = vmul.f32 %v385, %v164
    %v396 = vmul.f32 %v390, %v169
    %397 = vmatprep.subr.mxu0 0.0
    %398 = vmatpush1.msra.mxu0 %v393
    %399 = vmatprep.subr.mxu0 0.0
    %400 = vmatpush1.msra.mxu0 %v394
    %401 = vmatprep.subr.mxu0 0.0
    %402 = vmatpush1.msra.mxu0 %v395
    %403 = vmatprep.subr.mxu0 0.0
    %404 = vmatpush1.msra.mxu0 %v396
    %405 = vmatprep.subr.mxu0 0.0
    %406 = vmatpush1.msra.mxu0 0.0
    %407 = vmatprep.subr.mxu0 0.0
    %408 = vmatpush1.msra.mxu0 0.0
    %409 = vmatprep.subr.mxu0 0.0
    %410 = vmatpush1.msra.mxu0 0.0
    %411 = vmatprep.subr.mxu0 0.0
    %412 = vmatpush1.msra.mxu0 0.0
    %413 = vmatprep.subr.mxu0 0.0
    %414 = vmatpush1.msra.mxu0 0.0
    %415 = vmatprep.subr.mxu0 0.0
    %416 = vmatpush1.msra.mxu0 0.0
    %417 = vmatprep.subr.mxu0 0.0
    %418 = vmatpush1.msra.mxu0 0.0
    %419 = vmatprep.subr.mxu0 0.0
    %420 = vmatpush1.msra.mxu0 0.0
    %421 = vmatprep.subr.mxu0 0.0
    %422 = vmatpush1.msra.mxu0 0.0
    %423 = vmatprep.subr.mxu0 0.0
    %424 = vmatpush1.msra.mxu0 0.0
    %425 = vmatprep.subr.mxu0 0.0
    %426 = vmatpush1.msra.mxu0 0.0
    %427 = vmatprep.subr.mxu0 0.0
    %428 = vmatpush1.msra.mxu0 0.0
    %429 = vmatprep.subr.mxu0 0.0
    %430 = vmatpush1.msra.mxu0 0.0
    %431 = vmatprep.subr.mxu0 0.0
    %432 = vmatpush1.msra.mxu0 0.0
    %433 = vmatprep.subr.mxu0 0.0
    %434 = vmatpush1.msra.mxu0 0.0
    %435 = vmatprep.subr.mxu0 0.0
    %436 = vmatpush1.msra.mxu0 0.0
    %437 = vmatprep.subr.mxu0 0.0
    %438 = vmatpush1.msra.mxu0 0.0
    %439 = vmatprep.subr.mxu0 0.0
    %440 = vmatpush1.msra.mxu0 0.0
    %441 = vmatprep.subr.mxu0 0.0
    %442 = vmatpush1.msra.mxu0 0.0
    %443 = vmatprep.subr.mxu0 0.0
    %444 = vmatpush1.msra.mxu0 0.0
    %445 = vmatprep.subr.mxu0 0.0
    %446 = vmatpush1.msra.mxu0 0.0
    %447 = vmatprep.subr.mxu0 0.0
    %448 = vmatpush1.msra.mxu0 0.0
    %449 = vmatprep.subr.mxu0 0.0
    %450 = vmatpush1.msra.mxu0 0.0
    %451 = vmatprep.subr.mxu0 0.0
    %452 = vmatpush1.msra.mxu0 0.0
    %453 = vmatprep.subr.mxu0 0.0
    %454 = vmatpush1.msra.mxu0 0.0
    %455 = vmatprep.subr.mxu0 0.0
    %456 = vmatpush1.msra.mxu0 0.0
    %457 = vmatprep.subr.mxu0 0.0
    %458 = vmatpush1.msra.mxu0 0.0
    %459 = vmatprep.subr.mxu0 0.0
    %460 = vmatpush1.msra.mxu0 0.0
    %461 = vmatprep.mubr.f32.mxu0 0.0
    %462 = vmatmul.mubr.f32.gmra.mrb[0].mxu0 %v177
    %v463 = vpop.f32.mrb[0].mxu0
    %v464 = vadd.f32 0.0, %v463
    %v465 = vpop.f32.mrb[0].mxu0
    %466 = vmatprep.mubr.f32.mxu0 0.0
    %467 = vmatmul.mubr.f32.gmra.mrb[0].mxu0 %v180
    %v468 = vpop.f32.mrb[0].mxu0
    %v469 = vadd.f32 0.0, %v468
    %v470 = vpop.f32.mrb[0].mxu0
    %471 = vmatprep.mubr.f32.mxu0 0.0
    %472 = vmatmul.mubr.f32.gmra.mrb[0].mxu0 %v183
    %v473 = vpop.f32.mrb[0].mxu0
    %v474 = vadd.f32 0.0, %v473
    %v475 = vpop.f32.mrb[0].mxu0
    %476 = vmatprep.mubr.f32.mxu0 0.0
    %477 = vmatmul.mubr.f32.gmra.mrb[0].mxu0 %v186
    %v478 = vpop.f32.mrb[0].mxu0
    %v479 = vadd.f32 0.0, %v478
    %v480 = vpop.f32.mrb[0].mxu0
    %481 = vdwg.mxu0
    %v482 = vmul.f32 %v464, %v154
    %v483 = vmul.f32 %v469, %v159
    %v484 = vmul.f32 %v474, %v164
    %v485 = vmul.f32 %v479, %v169
    %v486 = vld [vmem:[%s6] sm:$0x1]
    %v488 = vlaneseq
    %v489 = vshrl.u32 %v488, 7
    %v490 = vsub.s32 0, %v489
    %v491 = vrot.slane %v486, %v490
    %v493 = vadd.f32 %v482, %v491
    %v494 = vadd.f32 %v483, %v491
    %v495 = vadd.f32 %v484, %v491
    %v496 = vadd.f32 %v485, %v491
    %v497 = vlaneseq
    %v498 = vand.u32 %v497, 127
    %vm499 = vcmp.lt.s32.totalorder %v498, 4
    %v500 = vsel %vm499, %v493, -1e+30
    %v501 = vsel %vm499, %v494, -1e+30
    %v502 = vsel %vm499, %v495, -1e+30
    %v503 = vsel %vm499, %v496, -1e+30
    %504 = vmax.xlane.f32.xlu0 %v500
    %v505 = vpop.xlane.xlu0 %504
    %506 = vmax.xlane.f32.xlu0 %v501
    %v507 = vpop.xlane.xlu0 %506
    %508 = vmax.xlane.f32.xlu0 %v502
    %v509 = vpop.xlane.xlu0 %508
    %510 = vmax.xlane.f32.xlu0 %v503
    %v511 = vpop.xlane.xlu0 %510
    %v512 = vsub.f32 %v500, %v505
    %v513 = vsub.f32 %v501, %v507
    %v514 = vsub.f32 %v502, %v509
    %v515 = vsub.f32 %v503, %v511
    %v516 = vmul.f32 %v512, 1.442695
    %v517 = vpow.pop %v516
    %v518 = vmul.f32 %v513, 1.442695
    %v519 = vpow.pop %v518
    %v520 = vmul.f32 %v514, 1.442695
    %v521 = vpow.pop %v520
    %v522 = vmul.f32 %v515, 1.442695
    %v523 = vpow.pop %v522
    %524 = vadd.xlane.f32.xlu0 %v517
    %v525 = vpop.xlane.xlu0 %524
    %526 = vadd.xlane.f32.xlu0 %v519
    %v527 = vpop.xlane.xlu0 %526
    %528 = vadd.xlane.f32.xlu0 %v521
    %v529 = vpop.xlane.xlu0 %528
    %530 = vadd.xlane.f32.xlu0 %v523
    %v531 = vpop.xlane.xlu0 %530
    %v532 = vlog2.pop %v525
    %v533 = vmul.f32 %v532, 0.6931472
    %v534 = vlog2.pop %v527
    %v535 = vmul.f32 %v534, 0.6931472
    %v536 = vlog2.pop %v529
    %v537 = vmul.f32 %v536, 0.6931472
    %v538 = vlog2.pop %v531
    %v539 = vmul.f32 %v538, 0.6931472
    %v540 = vsub.f32 %v512, %v533
    %v541 = vsub.f32 %v513, %v535
    %v542 = vsub.f32 %v514, %v537
    %v543 = vsub.f32 %v515, %v539
    %544 = vst [vmem:[%s7] sm:$0xff] %v540
    %545 = vst [vmem:[%s7 + $0x8] sm:$0xff] %v541
    %546 = vst [vmem:[%s7 + $0x10] sm:$0xff] %v542
    %547 = vst [vmem:[%s7 + $0x18] sm:$0xff] %v543
    // Predicated region
    $region34: #{gcn_forward.1} parent=1 // pred_check
      _
    $region35: #{gcn_forward.1} parent=1 // pred_check_branch
      %549 = sbr.rel (0) target = $region37
    $region36: #{gcn_forward.1} parent=1 // pred_region
      _
    $region37: #{gcn_forward.1} parent=1 // pred_fallthru
      _
    // Predicated region
    $region38: #{gcn_forward.1} parent=1 // pred_check
      _
    $region39: #{gcn_forward.1} parent=1 // pred_check_branch
      %551 = sbr.rel (0) target = $region41
    $region40: #{gcn_forward.1} parent=1 // pred_region
      _
    $region41: #{gcn_forward.1} parent=1 // pred_fallthru
      _
    %552 = vsyncpa [#allocation3], 1

</llo_original>
